<compile_context>
chip_gen: v7x
topology: tpu7x:2x2x1
jax: 0.10.0
libtpu: 0.0.40
codegen_flags: <defaults>
</compile_context>

<pallas_src>
import jax
import jax.numpy as jnp
from jax.experimental import pallas as pl
from jax.experimental.pallas import tpu as pltpu


def _round_up(a: int, b: int) -> int:
    return ((a + b - 1) // b) * b


def _pick_tile(dim: int, tile: int, align: int) -> int:
    """Tile for a non-reduction axis: full dim if it fits, else an
    `align`-aligned tile (boundary blocks may be partial; OOB writes are
    discarded, OOB reads only feed discarded rows/cols)."""
    if dim <= tile:
        return dim
    return max(align, (tile // align) * align)


def _pick_tile_k(dim: int, tile: int) -> int:
    """Tile for the reduction (K) axis: must cover K exactly (no OOB garbage
    may enter the accumulation).  Prefer the largest multiple-of-128 divisor
    of K that fits; otherwise fall back to a single full-K block."""
    if dim <= tile:
        return dim
    best = 0
    for cand in range(128, (tile // 128) * 128 + 1, 128):
        if dim % cand == 0:
            best = cand
    return best if best > 0 else dim


def _linear_kernel(x_ref, w_ref, b_ref, o_ref):
    # x_ref : (TM, TK) compute dtype (tokens, in-feature slice)
    # w_ref : (TK, TN) compute dtype (W already transposed to [in, out])
    # b_ref : (1, TN)  f32
    # o_ref : (TM, TN) f32 -- its block index ignores the K grid axis, so the
    #         block is VMEM-resident across K and doubles as the accumulator.
    @pl.when(pl.program_id(2) == 0)
    def _():
        o_ref[...] = jnp.broadcast_to(b_ref[...], o_ref.shape)

    # MXU-native dot: no transpose, no in-kernel dtype cast, f32 accumulation.
    o_ref[...] += jnp.dot(x_ref[...], w_ref[...],
                          preferred_element_type=jnp.float32)


def dummy_expert_forward(x, weight, bias, *,
                         tile_m=512, tile_n=512, tile_k=1024,
                         compute_dtype=jnp.bfloat16):
    """y = x @ weight.T + bias (exactly nn.Linear semantics, f32 accumulation).

    x:      [M, H] float32 tokens
    weight: [H, H] float32, PyTorch layout [out_features, in_features]
    bias:   [H]    float32
    compute_dtype: dtype fed to the MXU.  bf16 (default) is exact for
        DummyExpert's integer-valued weights and halves HBM traffic; pass
        jnp.float32 for exact f32 semantics on arbitrary weights.
    """
    M, H = x.shape
    assert weight.shape == (H, H) and bias.shape == (H,)

    tm = _pick_tile(M, tile_m, 8)
    tn = _pick_tile(H, tile_n, 128)
    tk = _pick_tile_k(H, tile_k)

    # v7x has 2 TensorCores: a big problem with a single M tile would leave one
    # core idle -- split it.  (On v5e/v6e this just adds one cheap grid step.)
    if M >= 256 and pl.cdiv(M, tm) == 1:
        tm = _round_up(-(-M // 2), 8)

    grid = (pl.cdiv(M, tm), pl.cdiv(H, tn), pl.cdiv(H, tk))

    # One-time wrapper-side prep (O(H^2), amortized across all M tiles/calls):
    #  * transpose W to [K, N] so the kernel dot is MXU-native,
    #  * cast x / W to the MXU input dtype (halves HBM traffic for bf16).
    xc = x if x.dtype == compute_dtype else x.astype(compute_dtype)
    wT = weight.T.astype(compute_dtype)            # [in, out] = [K, N]
    b2 = bias.reshape(1, H).astype(jnp.float32)

    in_itemsize = int(jnp.dtype(compute_dtype).itemsize)
    vmem_bytes = (
        2 * (tm * tk * in_itemsize      # x tile (double-buffered)
             + tk * tn * in_itemsize    # W tile (double-buffered)
             + tn * 4)                  # bias tile
        + 2 * (tm * tn * 4)             # f32 output / accumulator tile
        + (4 << 20)                     # headroom
    )
    vmem_bytes = max(16 << 20, min(int(vmem_bytes), 64 << 20))

    out = pl.pallas_call(
        _linear_kernel,
        out_shape=jax.ShapeDtypeStruct((M, H), jnp.float32),
        grid_spec=pltpu.PrefetchScalarGridSpec(
            num_scalar_prefetch=0,
            grid=grid,
            in_specs=[
                pl.BlockSpec((tm, tk), lambda i, j, k: (i, k)),  # x tile
                pl.BlockSpec((tk, tn), lambda i, j, k: (k, j)),  # W^T tile [K, N]
                pl.BlockSpec((1, tn), lambda i, j, k: (0, j)),   # bias tile
            ],
            out_specs=pl.BlockSpec((tm, tn), lambda i, j, k: (i, j)),
        ),
        compiler_params=pltpu.CompilerParams(
            dimension_semantics=("parallel", "parallel", "arbitrary"),
            vmem_limit_bytes=int(vmem_bytes),
        ),
    )(xc, wT, b2)

    return out


if __name__ == "__main__":
    # DummyExpert config: weight = expert_id + 1 (constant), bias = 0.
    hidden_size = 32
    expert_id = 2

    weight = jnp.full((hidden_size, hidden_size), float(expert_id + 1), dtype=jnp.float32)
    bias = jnp.zeros((hidden_size,), dtype=jnp.float32)

    key = jax.random.PRNGKey(0)
    batch, seq = 2, 8
    x = jax.random.normal(key, (batch, seq, hidden_size), dtype=jnp.float32)

    # Flatten leading dims (plain JAX glue), run the Pallas kernel.
    x2d = x.reshape(batch * seq, hidden_size)
    y2d = dummy_expert_forward(x2d, weight, bias)            # bf16 MXU path
    y = y2d.reshape(batch, seq, hidden_size)
    jax.block_until_ready(y)

    ref2d = jnp.dot(x2d, weight.T, precision=jax.lax.Precision.HIGHEST) + bias
    # bf16 inputs / f32 accumulation -> tolerance relaxed knowingly.
    assert jnp.allclose(y2d, ref2d, atol=2e-1, rtol=2e-2), "bf16 path mismatch"

    # Exact f32 path.
    y32 = dummy_expert_forward(x2d, weight, bias, compute_dtype=jnp.float32)
    jax.block_until_ready(y32)
    assert jnp.allclose(y32, ref2d, atol=1e-3, rtol=1e-3), "f32 path mismatch"

    # Multi-tile grid (2, 2, 2): exercises the K-accumulation / pl.when init.
    m3, h3 = 32, 256
    w3 = jnp.full((h3, h3), float(expert_id + 1), dtype=jnp.float32)
    b3 = jnp.linspace(-1.0, 1.0, h3, dtype=jnp.float32)
    x3 = jax.random.normal(jax.random.PRNGKey(1), (m3, h3), dtype=jnp.float32)
    y3 = dummy_expert_forward(x3, w3, b3, tile_m=16, tile_n=128, tile_k=128)
    jax.block_until_ready(y3)
    ref3 = jnp.dot(x3, w3.T, precision=jax.lax.Precision.HIGHEST) + b3
    assert jnp.allclose(y3, ref3, atol=5e-1, rtol=2e-2), "tiled path mismatch"

    # Ragged / non-128-aligned hidden: full-dim blocks, no padded copy of x.
    m4, h4 = 13, 96
    w4 = jnp.full((h4, h4), float(expert_id + 1), dtype=jnp.float32)
    b4 = jnp.zeros((h4,), dtype=jnp.float32)
    x4 = jax.random.normal(jax.random.PRNGKey(2), (m4, h4), dtype=jnp.float32)
    y4 = dummy_expert_forward(x4, w4, b4)
    jax.block_until_ready(y4)
    ref4 = jnp.dot(x4, w4.T, precision=jax.lax.Precision.HIGHEST) + b4
    assert jnp.allclose(y4, ref4, atol=2e-1, rtol=2e-2), "ragged path mismatch"

    print("KERNEL_OK")
</pallas_src>

<mosaic_0001>
module attributes {stable_mosaic.version = 11 : i64} {
  func.func @_linear_kernel(%arg0: i32, %arg1: i32, %arg2: i32, %arg3: memref<16x32xbf16, #tpu.memory_space<vmem>>, %arg4: memref<32x32xbf16, #tpu.memory_space<vmem>>, %arg5: memref<1x32xf32, #tpu.memory_space<vmem>>, %arg6: memref<16x32xf32, #tpu.memory_space<vmem>>) attributes {dimension_semantics = [#tpu.dimension_semantics<parallel>, #tpu.dimension_semantics<parallel>, #tpu.dimension_semantics<arbitrary>], iteration_bounds = array<i64: 1, 1, 1>, scalar_prefetch = 0 : i64, scratch_operands = 0 : i64, tpu.core_type = #tpu.core_type<tc>, window_params = [{transform_indices = @transform_0, window_bounds = array<i64: 16, 32>}, {transform_indices = @transform_1, window_bounds = array<i64: 32, 32>}, {transform_indices = @transform_2, window_bounds = array<i64: 1, 32>}, {transform_indices = @transform_3, window_bounds = array<i64: 16, 32>}]} {
    %c0_i32 = arith.constant 0 : i32
    %0 = arith.cmpi eq, %arg2, %c0_i32 : i32
    %1 = arith.extui %0 : i1 to i32
    %c0_i32_0 = arith.constant 0 : i32
    %2 = arith.cmpi ne, %1, %c0_i32_0 : i32
    scf.if %2 {
      %c0_8 = arith.constant 0 : index
      %c0_9 = arith.constant 0 : index
      %9 = vector.load %arg5[%c0_8, %c0_9] : memref<1x32xf32, #tpu.memory_space<vmem>>, vector<1x32xf32>
      %10 = vector.shape_cast %9 : vector<1x32xf32> to vector<1x32xf32>
      %11 = vector.broadcast %10 : vector<1x32xf32> to vector<16x32xf32>
      %c0_10 = arith.constant 0 : index
      %c0_11 = arith.constant 0 : index
      %12 = vector.load %arg6[%c0_10, %c0_11] : memref<16x32xf32, #tpu.memory_space<vmem>>, vector<16x32xf32>
      tpu.vector_store %arg6[%c0_10, %c0_11], %11 {strides = array<i32>} : memref<16x32xf32, #tpu.memory_space<vmem>>, vector<16x32xf32>,
    } else {
    }
    %c0 = arith.constant 0 : index
    %c0_1 = arith.constant 0 : index
    %3 = vector.load %arg6[%c0, %c0_1] : memref<16x32xf32, #tpu.memory_space<vmem>>, vector<16x32xf32>
    %c0_2 = arith.constant 0 : index
    %c0_3 = arith.constant 0 : index
    %4 = vector.load %arg3[%c0_2, %c0_3] : memref<16x32xbf16, #tpu.memory_space<vmem>>, vector<16x32xbf16>
    %c0_4 = arith.constant 0 : index
    %c0_5 = arith.constant 0 : index
    %5 = vector.load %arg4[%c0_4, %c0_5] : memref<32x32xbf16, #tpu.memory_space<vmem>>, vector<32x32xbf16>
    %cst = arith.constant dense<0.000000e+00> : vector<16x32xf32>
    %6 = tpu.matmul %4, %5, %cst {dimension_numbers = #tpu.dot_dimension_numbers<[1], [0], [0], [1], [0, 0, 1, 1], [], []>} : vector<16x32xbf16>, vector<32x32xbf16>, vector<16x32xf32> -> vector<16x32xf32>
    %7 = arith.addf %3, %6 : vector<16x32xf32>
    %c0_6 = arith.constant 0 : index
    %c0_7 = arith.constant 0 : index
    %8 = vector.load %arg6[%c0_6, %c0_7] : memref<16x32xf32, #tpu.memory_space<vmem>>, vector<16x32xf32>
    tpu.vector_store %arg6[%c0_6, %c0_7], %7 {strides = array<i32>} : memref<16x32xf32, #tpu.memory_space<vmem>>, vector<16x32xf32>,
    return
  }
  func.func @transform_0(%arg0: i32, %arg1: i32, %arg2: i32) -> (i32, i32) {
    %c0_i32 = arith.constant 0 : i32
    return %arg0, %arg2 : i32, i32
  }
  func.func @transform_1(%arg0: i32, %arg1: i32, %arg2: i32) -> (i32, i32) {
    %c0_i32 = arith.constant 0 : i32
    return %arg2, %arg1 : i32, i32
  }
  func.func @transform_2(%arg0: i32, %arg1: i32, %arg2: i32) -> (i32, i32) {
    %c0_i32 = arith.constant 0 : i32
    %c0_i32_0 = arith.constant 0 : i32
    return %c0_i32, %arg1 : i32, i32
  }
  func.func @transform_3(%arg0: i32, %arg1: i32, %arg2: i32) -> (i32, i32) {
    %c0_i32 = arith.constant 0 : i32
    return %arg0, %arg1 : i32, i32
  }
}

</mosaic_0001>

<llo_original>
// kernel: tpu_custom_call.1
$region0: #{tpu_custom_call.1}
  #allocation0 [shape = 'u32[]', space=smem, size = 0x4, offset = 0x4, fixed_abs, tag = 'smem constant byte address 0x4 - core index']
  #allocation1 [shape = 'u32[144,128]{1,0:T(1,128)}', space=vmem, size = 0x12000, scoped, tag = 'internal scratch']
  %s0 = inlined_call_operand.hbm [shape: bf16[16,32], index: 0, kind: input, shape index: {}]
  %s1 = inlined_call_operand.hbm [shape: bf16[32,32], index: 1, kind: input, shape index: {}]
  %s2 = inlined_call_operand.vmem [shape: f32[1,32], index: 2, kind: input, shape index: {}]
  %s3 = inlined_call_operand.hbm [shape: f32[16,32], index: 3, kind: output, shape index: {}]
  %s4 = sld [smem:[#allocation0]]
  $region34: #{tpu_custom_call.1} parent=0
    _
  %s6 = ssub.s32 1, %s4
  %s7 = scalar_select 0, %s6, %s4
  $region1: #{tpu_custom_call.1} parent=0
    #allocation2 [shape = 'u8[4096]{0}', space=vmem, size = 0x1000, scoped, tag = 'input window, operand 0, single buffered']
    #allocation3 [shape = 's32[1]{0}', space=sflag, size = 0x4, scoped, tag = 'scoped memory for tpu_custom_call.1']
    #allocation4 [shape = 's32[1]{0}', space=sflag, size = 0x4, scoped, tag = 'scoped memory for tpu_custom_call.1']
    #allocation5 [shape = 'u8[8192]{0}', space=vmem, size = 0x2000, scoped, tag = 'input window, operand 1, single buffered']
    #allocation6 [shape = 's32[1]{0}', space=sflag, size = 0x4, scoped, tag = 'scoped memory for tpu_custom_call.1']
    #allocation7 [shape = 'u8[8192]{0}', space=vmem, size = 0x2000, scoped, tag = 'output window, operand 0, single buffered']
    %8 = vsyncpa [#allocation3], 0
    %9 = vsyncpa [#allocation6], 0
    %10 = vsyncpa [#allocation4], 0
    // Predicated region
    $region2: #{tpu_custom_call.1} parent=1 // pred_check
      _
    $region3: #{tpu_custom_call.1} parent=1 // pred_check_branch
      %12 = sbr.rel (0) target = $region5
    $region4: #{tpu_custom_call.1} parent=1 // pred_region
      %s14 = ssub.s32 128, 128
      %15 = vsyncadd [#allocation3], %s14
      %s16 = sshll.u32 [#allocation2], 4
      %s17 = int_to_ptr.vmem [resolvable:$true] %s16
      %22 = dma.hbm_to_vmem [thread:$0]  %s0, 128, %s17, [#allocation3], 64, 64, 4
    $region5: #{tpu_custom_call.1} parent=1 // pred_fallthru
      _
    // Predicated region
    $region6: #{tpu_custom_call.1} parent=1 // pred_check
      _
    $region7: #{tpu_custom_call.1} parent=1 // pred_check_branch
      %24 = sbr.rel (0) target = $region9
    $region8: #{tpu_custom_call.1} parent=1 // pred_region
      %s26 = ssub.s32 256, 256
      %27 = vsyncadd [#allocation6], %s26
      %s28 = sshll.u32 [#allocation5], 4
      %s29 = int_to_ptr.vmem [resolvable:$true] %s28
      %34 = dma.hbm_to_vmem [thread:$0]  %s1, 256, %s29, [#allocation6], 64, 64, 4
    $region9: #{tpu_custom_call.1} parent=1 // pred_fallthru
      _
    // Predicated region
    $region10: #{tpu_custom_call.1} parent=1 // pred_check
      _
    $region11: #{tpu_custom_call.1} parent=1 // pred_check_branch
      %36 = sbr.rel (0) target = $region13
    $region12: #{tpu_custom_call.1} parent=1 // pred_region
      _
    $region13: #{tpu_custom_call.1} parent=1 // pred_fallthru
      _
    // Predicated region
    $region14: #{tpu_custom_call.1} parent=1 // pred_check
      _
    $region15: #{tpu_custom_call.1} parent=1 // pred_check_branch
      %38 = sbr.rel (0) target = $region17
    $region16: #{tpu_custom_call.1} parent=1 // pred_region
      %39 = dma.done [#allocation3], 128
    $region17: #{tpu_custom_call.1} parent=1 // pred_fallthru
      _
    // Predicated region
    $region18: #{tpu_custom_call.1} parent=1 // pred_check
      _
    $region19: #{tpu_custom_call.1} parent=1 // pred_check_branch
      %41 = sbr.rel (0) target = $region21
    $region20: #{tpu_custom_call.1} parent=1 // pred_region
      %42 = dma.done [#allocation6], 256
    $region21: #{tpu_custom_call.1} parent=1 // pred_fallthru
      _
    %p44 = scmp.eq.s32.totalorder 0, 0
    // Predicated region
    $region22: #{tpu_custom_call.1} parent=1 // pred_check
      %p45 = pneg %p44
    $region23: #{tpu_custom_call.1} parent=1 // pred_check_branch
      %47 = sbr.rel (%p45) target = $region25
    $region24: #{tpu_custom_call.1} parent=1 // pred_region
      %v48 = vld [vmem:[%s2] sm:$0x1]
      %v50 = vlaneseq
      %v51 = vshrl.u32 %v50, 7
      %v52 = vsub.s32 0, %v51
      %v53 = vrot.slane %v48, %v52
      %vm55 = vcmask 261120
      %56 = vst.msk [vmem:[#allocation7] sm:$0xff] %vm55, %v53
      %57 = vst.msk [vmem:[#allocation7 + $0x8] sm:$0xff] %vm55, %v53
    $region25: #{tpu_custom_call.1} parent=1 // pred_fallthru
      _
    %v58 = vld [vmem:[#allocation7] sm:$0xff]
    %v59 = vld [vmem:[#allocation7 + $0x8] sm:$0xff]
    %v60 = vld [vmem:[#allocation2] sm:$0xf]
    %v61 = vld [vmem:[#allocation2 + $0x4] sm:$0xf]
    %v62 = vld [vmem:[#allocation5] sm:$0xf]
    %v63 = vld [vmem:[#allocation5 + $0x4] sm:$0xf]
    %v64 = vld [vmem:[#allocation5 + $0x8] sm:$0xf]
    %v65 = vld [vmem:[#allocation5 + $0xc] sm:$0xf]
    %v68 = vunpack.c.l.b16 %v60
    %v69 = vunpack.c.l.b16 %v61
    %v70 = vpack.c.b16 %v69, %v68
    %v75 = vunpack.c.l.b16 %v62
    %v76 = vunpack.c.l.b16 %v63
    %v77 = vunpack.c.l.b16 %v64
    %v78 = vunpack.c.l.b16 %v65
    %v79 = vpack.c.b16 %v76, %v75
    %v80 = vpack.c.b16 %v78, %v77
    %vm83 = vcmask 261120
    %v85 = vsel %vm83, %v70, 0
    %87 = vmatprep.subr.bf16.mxu0 0
    %88 = vmatpush1.bf16.msra.mxu0 %v79
    %89 = vmatprep.subr.bf16.mxu0 0
    %90 = vmatpush1.bf16.msra.mxu0 %v80
    %91 = vmatprep.subr.bf16.mxu0 0
    %92 = vmatpush1.bf16.msra.mxu0 0
    %93 = vmatprep.subr.bf16.mxu0 0
    %94 = vmatpush1.bf16.msra.mxu0 0
    %95 = vmatprep.subr.bf16.mxu0 0
    %96 = vmatpush1.bf16.msra.mxu0 0
    %97 = vmatprep.subr.bf16.mxu0 0
    %98 = vmatpush1.bf16.msra.mxu0 0
    %99 = vmatprep.subr.bf16.mxu0 0
    %100 = vmatpush1.bf16.msra.mxu0 0
    %101 = vmatprep.subr.bf16.mxu0 0
    %102 = vmatpush1.bf16.msra.mxu0 0
    %103 = vmatprep.subr.bf16.mxu0 0
    %104 = vmatpush1.bf16.msra.mxu0 0
    %105 = vmatprep.subr.bf16.mxu0 0
    %106 = vmatpush1.bf16.msra.mxu0 0
    %107 = vmatprep.subr.bf16.mxu0 0
    %108 = vmatpush1.bf16.msra.mxu0 0
    %109 = vmatprep.subr.bf16.mxu0 0
    %110 = vmatpush1.bf16.msra.mxu0 0
    %111 = vmatprep.subr.bf16.mxu0 0
    %112 = vmatpush1.bf16.msra.mxu0 0
    %113 = vmatprep.subr.bf16.mxu0 0
    %114 = vmatpush1.bf16.msra.mxu0 0
    %115 = vmatprep.subr.bf16.mxu0 0
    %116 = vmatpush1.bf16.msra.mxu0 0
    %117 = vmatprep.subr.bf16.mxu0 0
    %118 = vmatpush1.bf16.msra.mxu0 0
    %119 = vmatprep.mubr.bf16.mxu0 0
    %120 = vmatmul.mubr.bf16.gmra.mrb[0].mxu0 %v85
    %v121 = vpop.f32.mrb[0].mxu0
    %v122 = vadd.f32 0.0, %v121
    %v123 = vpop.f32.mrb[0].mxu0
    %v124 = vpop.f32.mrb[0].mxu0
    %v125 = vadd.f32 0.0, %v124
    %v126 = vpop.f32.mrb[0].mxu0
    %127 = vdwg.mxu0
    %v128 = vadd.f32 %v58, %v122
    %v129 = vadd.f32 %v59, %v125
    %130 = vst.msk [vmem:[#allocation7] sm:$0xff] %vm83, %v128
    %131 = vst.msk [vmem:[#allocation7 + $0x8] sm:$0xff] %vm83, %v129
    // Predicated region
    $region26: #{tpu_custom_call.1} parent=1 // pred_check
      _
    $region27: #{tpu_custom_call.1} parent=1 // pred_check_branch
      %133 = sbr.rel (0) target = $region29
    $region28: #{tpu_custom_call.1} parent=1 // pred_region
      %s135 = ssub.s32 256, 256
      %136 = vsyncadd [#allocation4], %s135
      %s137 = sshll.u32 [#allocation7], 4
      %s138 = int_to_ptr.vmem [resolvable:$true] %s137
      %143 = dma.vmem_to_hbm [thread:$0]  %s138, 256, %s3, [#allocation4], 128, 128, 8
    $region29: #{tpu_custom_call.1} parent=1 // pred_fallthru
      _
    // Predicated region
    $region30: #{tpu_custom_call.1} parent=1 // pred_check
      _
    $region31: #{tpu_custom_call.1} parent=1 // pred_check_branch
      %145 = sbr.rel (0) target = $region33
    $region32: #{tpu_custom_call.1} parent=1 // pred_region
      %146 = dma.done [#allocation4], 256
    $region33: #{tpu_custom_call.1} parent=1 // pred_fallthru
      _
    %147 = vsyncpa [#allocation3], 1
    %148 = vsyncpa [#allocation6], 1
    %149 = vsyncpa [#allocation4], 1

</llo_original>
